<compile_context>
chip_gen: v5e
topology: v5e:2x2
jax: 0.10.0
libtpu: 0.0.40
codegen_flags: <defaults>
</compile_context>

<pallas_src>
import jax
import jax.numpy as jnp
from jax.experimental import pallas as pl
from jax.experimental.pallas import tpu as pltpu

_PD_EPS = 1e-6   # torch.nn.functional.pairwise_distance default eps


def _triplet_kernel(x_ref, w_ref, b_ref, y_ref, z_ref, ex_ref, dist_ref):
    # Embedding net (modeled as Linear): MXU matmul with f32 accumulation.
    ex = jnp.dot(x_ref[...], w_ref[...],
                 preferred_element_type=jnp.float32) + b_ref[...]
    ex_ref[...] = ex.astype(ex_ref.dtype)

    # F.pairwise_distance(a, b, p=2): ||a - b + eps||_2 along the feature axis.
    dy = ex - y_ref[...].astype(jnp.float32) + _PD_EPS
    dz = ex - z_ref[...].astype(jnp.float32) + _PD_EPS
    da = jnp.sqrt(jnp.sum(dy * dy, axis=-1))   # (TB,)
    db = jnp.sqrt(jnp.sum(dz * dz, axis=-1))   # (TB,)

    # Lane-dense packed store: row 0 = dist_a, row 1 = dist_b over the batch.
    dist_ref[...] = jnp.stack([da, db], axis=0).astype(dist_ref.dtype)


def _pick_block_b(B):
    """Large lane-aligned batch tiles; whole batch in one step for small B."""
    if B <= 512:
        return B
    for cand in (512, 256, 128):          # multiples of 128 -> lane-dense dists
        if B % cand == 0:
            return cand
    return B                               # fallback: single grid step


def triplet_network(x, y, z, w, b, *, block_b=None):
    """Returns (dist_a, dist_b, embedded_x, embedded_y, embedded_z)."""
    B, Din = x.shape
    Demb = w.shape[1]
    if block_b is None:
        block_b = _pick_block_b(B)
    assert B % block_b == 0, "batch must be divisible by the batch tile"
    grid = (B // block_b,)

    b2d = b.reshape(1, Demb)

    ex, dists = pl.pallas_call(
        _triplet_kernel,
        grid=grid,
        in_specs=[
            pl.BlockSpec((block_b, Din), lambda i: (i, 0)),    # x tile
            pl.BlockSpec((Din, Demb), lambda i: (0, 0)),       # W (resident)
            pl.BlockSpec((1, Demb), lambda i: (0, 0)),         # bias (resident)
            pl.BlockSpec((block_b, Demb), lambda i: (i, 0)),   # y tile
            pl.BlockSpec((block_b, Demb), lambda i: (i, 0)),   # z tile
        ],
        out_specs=(
            pl.BlockSpec((block_b, Demb), lambda i: (i, 0)),   # embedded_x
            pl.BlockSpec((2, block_b), lambda i: (0, i)),      # packed distances
        ),
        out_shape=(
            jax.ShapeDtypeStruct((B, Demb), jnp.float32),
            jax.ShapeDtypeStruct((2, B), jnp.float32),
        ),
        compiler_params=pltpu.CompilerParams(
            dimension_semantics=("parallel",),
            vmem_limit_bytes=32 * 1024 * 1024),
    )(x, w, b2d, y, z)

    dist_a = dists[0]
    dist_b = dists[1]
    return dist_a, dist_b, ex, y, z


def _reference(x, y, z, w, b):
    ex = x @ w + b
    da = jnp.sqrt(jnp.sum((ex - y + _PD_EPS) ** 2, axis=1))
    db = jnp.sqrt(jnp.sum((ex - z + _PD_EPS) ** 2, axis=1))
    return da, db, ex, y, z


if __name__ == "__main__":
    key = jax.random.PRNGKey(0)
    kx, ky, kz, kw, kb = jax.random.split(key, 5)

    # Small but lane-aligned shapes: 16-row batch (one grid step), 128 lanes.
    B, D_IN, D_EMB = 16, 128, 128

    x = jax.random.normal(kx, (B, D_IN), dtype=jnp.float32)
    y = jax.random.normal(ky, (B, D_EMB), dtype=jnp.float32)
    z = jax.random.normal(kz, (B, D_EMB), dtype=jnp.float32)

    # Deterministic Linear-layer parameters (synthetic embeddingnet_att).
    w = jax.random.normal(kw, (D_IN, D_EMB), dtype=jnp.float32) * 0.1
    b = jax.random.normal(kb, (D_EMB,), dtype=jnp.float32) * 0.1

    outs = triplet_network(x, y, z, w, b)
    outs = jax.block_until_ready(outs)

    refs = _reference(x, y, z, w, b)
    for o, r in zip(outs, refs):
        assert jnp.allclose(o, r, atol=1e-4, rtol=1e-4), "mismatch vs reference"

    print("KERNEL_OK")
</pallas_src>

<mosaic_0001>
module attributes {stable_mosaic.version = 11 : i64} {
  func.func @_triplet_kernel(%arg0: i32, %arg1: memref<16x128xf32, #tpu.memory_space<vmem>>, %arg2: memref<128x128xf32, #tpu.memory_space<vmem>>, %arg3: memref<1x128xf32, #tpu.memory_space<vmem>>, %arg4: memref<16x128xf32, #tpu.memory_space<vmem>>, %arg5: memref<16x128xf32, #tpu.memory_space<vmem>>, %arg6: memref<16x128xf32, #tpu.memory_space<vmem>>, %arg7: memref<2x16xf32, #tpu.memory_space<vmem>>) attributes {dimension_semantics = [#tpu.dimension_semantics<parallel>], iteration_bounds = array<i64: 1>, scalar_prefetch = 0 : i64, scratch_operands = 0 : i64, tpu.core_type = #tpu.core_type<tc>, window_params = [{transform_indices = @transform_0, window_bounds = array<i64: 16, 128>}, {pipeline_mode = #tpu.pipeline_mode<synchronous>, transform_indices = @transform_1, window_bounds = array<i64: 128, 128>}, {pipeline_mode = #tpu.pipeline_mode<synchronous>, transform_indices = @transform_2, window_bounds = array<i64: 1, 128>}, {transform_indices = @transform_3, window_bounds = array<i64: 16, 128>}, {transform_indices = @transform_4, window_bounds = array<i64: 16, 128>}, {transform_indices = @transform_5, window_bounds = array<i64: 16, 128>}, {transform_indices = @transform_6, window_bounds = array<i64: 2, 16>}]} {
    %c0 = arith.constant 0 : index
    %c0_0 = arith.constant 0 : index
    %0 = vector.load %arg1[%c0, %c0_0] : memref<16x128xf32, #tpu.memory_space<vmem>>, vector<16x128xf32>
    %c0_1 = arith.constant 0 : index
    %c0_2 = arith.constant 0 : index
    %1 = vector.load %arg2[%c0_1, %c0_2] : memref<128x128xf32, #tpu.memory_space<vmem>>, vector<128x128xf32>
    %cst = arith.constant dense<0.000000e+00> : vector<16x128xf32>
    %2 = tpu.matmul %0, %1, %cst {dimension_numbers = #tpu.dot_dimension_numbers<[1], [0], [0], [1], [0, 0, 1, 1], [], []>} : vector<16x128xf32>, vector<128x128xf32>, vector<16x128xf32> -> vector<16x128xf32>
    %c0_3 = arith.constant 0 : index
    %c0_4 = arith.constant 0 : index
    %3 = vector.load %arg3[%c0_3, %c0_4] : memref<1x128xf32, #tpu.memory_space<vmem>>, vector<1x128xf32>
    %4 = vector.broadcast %3 : vector<1x128xf32> to vector<16x128xf32>
    %5 = arith.addf %2, %4 : vector<16x128xf32>
    %c0_5 = arith.constant 0 : index
    %c0_6 = arith.constant 0 : index
    %6 = vector.load %arg6[%c0_5, %c0_6] : memref<16x128xf32, #tpu.memory_space<vmem>>, vector<16x128xf32>
    tpu.vector_store %arg6[%c0_5, %c0_6], %5 {strides = array<i32>} : memref<16x128xf32, #tpu.memory_space<vmem>>, vector<16x128xf32>,
    %c0_7 = arith.constant 0 : index
    %c0_8 = arith.constant 0 : index
    %7 = vector.load %arg4[%c0_7, %c0_8] : memref<16x128xf32, #tpu.memory_space<vmem>>, vector<16x128xf32>
    %8 = arith.subf %5, %7 : vector<16x128xf32>
    %cst_9 = arith.constant 9.99999997E-7 : f32
    %9 = vector.broadcast %cst_9 : f32 to vector<16x128xf32>
    %10 = arith.addf %8, %9 : vector<16x128xf32>
    %c0_10 = arith.constant 0 : index
    %c0_11 = arith.constant 0 : index
    %11 = vector.load %arg5[%c0_10, %c0_11] : memref<16x128xf32, #tpu.memory_space<vmem>>, vector<16x128xf32>
    %12 = arith.subf %5, %11 : vector<16x128xf32>
    %cst_12 = arith.constant 9.99999997E-7 : f32
    %13 = vector.broadcast %cst_12 : f32 to vector<16x128xf32>
    %14 = arith.addf %12, %13 : vector<16x128xf32>
    %15 = arith.mulf %10, %10 : vector<16x128xf32>
    %cst_13 = arith.constant dense<0.000000e+00> : vector<16xf32>
    %16 = vector.multi_reduction <add>, %15, %cst_13 [1] : vector<16x128xf32> to vector<16xf32>
    %17 = math.sqrt %16 : vector<16xf32>
    %18 = arith.mulf %14, %14 : vector<16x128xf32>
    %cst_14 = arith.constant dense<0.000000e+00> : vector<16xf32>
    %19 = vector.multi_reduction <add>, %18, %cst_14 [1] : vector<16x128xf32> to vector<16xf32>
    %20 = math.sqrt %19 : vector<16xf32>
    %21 = vector.shape_cast %17 : vector<16xf32> to vector<1x16xf32>
    %22 = vector.shape_cast %20 : vector<16xf32> to vector<1x16xf32>
    %23 = tpu.concatenate %21, %22 in 0 : vector<1x16xf32>, vector<1x16xf32> -> vector<2x16xf32>
    %c0_15 = arith.constant 0 : index
    %c0_16 = arith.constant 0 : index
    %24 = vector.load %arg7[%c0_15, %c0_16] : memref<2x16xf32, #tpu.memory_space<vmem>>, vector<2x16xf32>
    tpu.vector_store %arg7[%c0_15, %c0_16], %23 {strides = array<i32>} : memref<2x16xf32, #tpu.memory_space<vmem>>, vector<2x16xf32>,
    return
  }
  func.func @transform_0(%arg0: i32) -> (i32, i32) {
    %c0_i32 = arith.constant 0 : i32
    %c0_i32_0 = arith.constant 0 : i32
    return %arg0, %c0_i32 : i32, i32
  }
  func.func @transform_1(%arg0: i32) -> (i32, i32) {
    %c0_i32 = arith.constant 0 : i32
    %c0_i32_0 = arith.constant 0 : i32
    %c0_i32_1 = arith.constant 0 : i32
    return %c0_i32, %c0_i32_0 : i32, i32
  }
  func.func @transform_2(%arg0: i32) -> (i32, i32) {
    %c0_i32 = arith.constant 0 : i32
    %c0_i32_0 = arith.constant 0 : i32
    %c0_i32_1 = arith.constant 0 : i32
    return %c0_i32, %c0_i32_0 : i32, i32
  }
  func.func @transform_3(%arg0: i32) -> (i32, i32) {
    %c0_i32 = arith.constant 0 : i32
    %c0_i32_0 = arith.constant 0 : i32
    return %arg0, %c0_i32 : i32, i32
  }
  func.func @transform_4(%arg0: i32) -> (i32, i32) {
    %c0_i32 = arith.constant 0 : i32
    %c0_i32_0 = arith.constant 0 : i32
    return %arg0, %c0_i32 : i32, i32
  }
  func.func @transform_5(%arg0: i32) -> (i32, i32) {
    %c0_i32 = arith.constant 0 : i32
    %c0_i32_0 = arith.constant 0 : i32
    return %arg0, %c0_i32 : i32, i32
  }
  func.func @transform_6(%arg0: i32) -> (i32, i32) {
    %c0_i32 = arith.constant 0 : i32
    %c0_i32_0 = arith.constant 0 : i32
    return %c0_i32, %arg0 : i32, i32
  }
}

</mosaic_0001>

<llo_original>
// kernel: tpu_custom_call.1
$region0: #{tpu_custom_call.1}
  #allocation0 [shape = 'u32[]', space=smem, size = 0x4, offset = 0x4, fixed_abs, tag = 'smem constant byte address 0x4 - core index']
  #allocation1 [shape = 'u32[72,128]{1,0:T(1,128)}', space=vmem, size = 0x9000, scoped, tag = 'internal scratch']
  %s0 = inlined_call_operand.hbm [shape: f32[16,128], index: 0, kind: input, shape index: {}]
  %s1 = inlined_call_operand.hbm [shape: f32[128,128], index: 1, kind: input, shape index: {}]
  %s2 = inlined_call_operand.vmem [shape: f32[1,128], index: 2, kind: input, shape index: {}]
  %s3 = inlined_call_operand.hbm [shape: f32[16,128], index: 3, kind: input, shape index: {}]
  %s4 = inlined_call_operand.hbm [shape: f32[16,128], index: 4, kind: input, shape index: {}]
  %s5 = inlined_call_operand.hbm [shape: f32[16,128], index: 5, kind: output, shape index: {0}]
  %s6 = inlined_call_operand.hbm [shape: f32[2,16], index: 6, kind: output, shape index: {1}]
  %7 = xla_tuple %s5, %s6
  %s8 = sld [smem:[#allocation0]]
  $region54: #{tpu_custom_call.1} parent=0
    _
  %s10 = ssub.s32 1, %s8
  %s11 = scalar_select 0, %s10, %s8
  $region1: #{tpu_custom_call.1} parent=0
    #allocation2 [shape = 'u8[8192]{0}', space=vmem, size = 0x2000, scoped, tag = 'input window, operand 0, single buffered']
    #allocation3 [shape = 's32[1]{0}', space=sflag, size = 0x4, scoped, tag = 'scoped memory for tpu_custom_call.1']
    #allocation4 [shape = 's32[1]{0}', space=sflag, size = 0x4, scoped, tag = 'scoped memory for tpu_custom_call.1']
    #allocation5 [shape = 'u8[65536]{0}', space=vmem, size = 0x10000, scoped, tag = 'input window, operand 1, single buffered']
    #allocation6 [shape = 's32[1]{0}', space=sflag, size = 0x4, scoped, tag = 'scoped memory for tpu_custom_call.1']
    #allocation7 [shape = 'u8[8192]{0}', space=vmem, size = 0x2000, scoped, tag = 'input window, operand 3, single buffered']
    #allocation8 [shape = 'u8[8192]{0}', space=vmem, size = 0x2000, scoped, tag = 'input window, operand 4, single buffered']
    #allocation9 [shape = 's32[1]{0}', space=sflag, size = 0x4, scoped, tag = 'scoped memory for tpu_custom_call.1']
    #allocation10 [shape = 'u8[8192]{0}', space=vmem, size = 0x2000, scoped, tag = 'output window, operand 0, single buffered']
    #allocation11 [shape = 'u8[1024]{0}', space=vmem, size = 0x400, scoped, tag = 'output window, operand 1, single buffered']
    #allocation12 [shape = 's32[1]{0}', space=sflag, size = 0x4, scoped, tag = 'scoped memory for tpu_custom_call.1']
    %12 = vsyncpa [#allocation3], 0
    %13 = vsyncpa [#allocation6], 0
    %14 = vsyncpa [#allocation9], 0
    %15 = vsyncpa [#allocation4], 0
    %16 = vsyncpa [#allocation12], 0
    // Predicated region
    $region2: #{tpu_custom_call.1} parent=1 // pred_check
      _
    $region3: #{tpu_custom_call.1} parent=1 // pred_check_branch
      %18 = sbr.rel (0) target = $region5
    $region4: #{tpu_custom_call.1} parent=1 // pred_region
      %20 = vsyncadd [#allocation3], 0
      %s21 = sshll.u32 %s0, 4
      %s22 = int_to_ptr.hbm [resolvable:$true] %s21
      %s23 = sshll.u32 [#allocation2], 4
      %s24 = int_to_ptr.vmem [resolvable:$true] %s23
      %29 = dma.hbm_to_vmem [thread:$0]  %s22, 256, %s24, [#allocation3], 128, 128, 8
    $region5: #{tpu_custom_call.1} parent=1 // pred_fallthru
      _
    // Predicated region
    $region6: #{tpu_custom_call.1} parent=1 // pred_check
      _
    $region7: #{tpu_custom_call.1} parent=1 // pred_check_branch
      %31 = sbr.rel (0) target = $region9
    $region8: #{tpu_custom_call.1} parent=1 // pred_region
      %33 = vsyncadd [#allocation6], 0
      %s34 = sshll.u32 %s1, 4
      %s35 = int_to_ptr.hbm [resolvable:$true] %s34
      %s36 = sshll.u32 [#allocation5], 4
      %s37 = int_to_ptr.vmem [resolvable:$true] %s36
      %42 = dma.hbm_to_vmem [thread:$0]  %s35, 2048, %s37, [#allocation6], 128, 128, 8
    $region9: #{tpu_custom_call.1} parent=1 // pred_fallthru
      _
    // Predicated region
    $region10: #{tpu_custom_call.1} parent=1 // pred_check
      _
    $region11: #{tpu_custom_call.1} parent=1 // pred_check_branch
      %44 = sbr.rel (0) target = $region13
    $region12: #{tpu_custom_call.1} parent=1 // pred_region
      _
    $region13: #{tpu_custom_call.1} parent=1 // pred_fallthru
      _
    // Predicated region
    $region14: #{tpu_custom_call.1} parent=1 // pred_check
      _
    $region15: #{tpu_custom_call.1} parent=1 // pred_check_branch
      %46 = sbr.rel (0) target = $region17
    $region16: #{tpu_custom_call.1} parent=1 // pred_region
      %48 = vsyncadd [#allocation6], 0
      %s49 = sshll.u32 %s3, 4
      %s50 = int_to_ptr.hbm [resolvable:$true] %s49
      %s51 = sshll.u32 [#allocation7], 4
      %s52 = int_to_ptr.vmem [resolvable:$true] %s51
      %57 = dma.hbm_to_vmem [thread:$0]  %s50, 256, %s52, [#allocation6], 128, 128, 8
    $region17: #{tpu_custom_call.1} parent=1 // pred_fallthru
      _
    // Predicated region
    $region18: #{tpu_custom_call.1} parent=1 // pred_check
      _
    $region19: #{tpu_custom_call.1} parent=1 // pred_check_branch
      %59 = sbr.rel (0) target = $region21
    $region20: #{tpu_custom_call.1} parent=1 // pred_region
      %61 = vsyncadd [#allocation9], 0
      %s62 = sshll.u32 %s4, 4
      %s63 = int_to_ptr.hbm [resolvable:$true] %s62
      %s64 = sshll.u32 [#allocation8], 4
      %s65 = int_to_ptr.vmem [resolvable:$true] %s64
      %70 = dma.hbm_to_vmem [thread:$0]  %s63, 256, %s65, [#allocation9], 128, 128, 8
    $region21: #{tpu_custom_call.1} parent=1 // pred_fallthru
      _
    // Predicated region
    $region22: #{tpu_custom_call.1} parent=1 // pred_check
      _
    $region23: #{tpu_custom_call.1} parent=1 // pred_check_branch
      %72 = sbr.rel (0) target = $region25
    $region24: #{tpu_custom_call.1} parent=1 // pred_region
      %74 = dma.done [#allocation3], 256
    $region25: #{tpu_custom_call.1} parent=1 // pred_fallthru
      _
    // Predicated region
    $region26: #{tpu_custom_call.1} parent=1 // pred_check
      _
    $region27: #{tpu_custom_call.1} parent=1 // pred_check_branch
      %76 = sbr.rel (0) target = $region29
    $region28: #{tpu_custom_call.1} parent=1 // pred_region
      %78 = dma.done [#allocation6], 2048
    $region29: #{tpu_custom_call.1} parent=1 // pred_fallthru
      _
    // Predicated region
    $region30: #{tpu_custom_call.1} parent=1 // pred_check
      _
    $region31: #{tpu_custom_call.1} parent=1 // pred_check_branch
      %80 = sbr.rel (0) target = $region33
    $region32: #{tpu_custom_call.1} parent=1 // pred_region
      %82 = dma.done [#allocation6], 256
    $region33: #{tpu_custom_call.1} parent=1 // pred_fallthru
      _
    // Predicated region
    $region34: #{tpu_custom_call.1} parent=1 // pred_check
      _
    $region35: #{tpu_custom_call.1} parent=1 // pred_check_branch
      %84 = sbr.rel (0) target = $region37
    $region36: #{tpu_custom_call.1} parent=1 // pred_region
      %86 = dma.done [#allocation9], 256
    $region37: #{tpu_custom_call.1} parent=1 // pred_fallthru
      _
    %v87 = vld [vmem:[#allocation2] sm:$0xff]
    %v88 = vld [vmem:[#allocation2 + $0x8] sm:$0xff]
    %v89 = vld [vmem:[#allocation5] sm:$0xff]
    %v90 = vld [vmem:[#allocation5 + $0x8] sm:$0xff]
    %v91 = vld [vmem:[#allocation5 + $0x10] sm:$0xff]
    %v92 = vld [vmem:[#allocation5 + $0x18] sm:$0xff]
    %v93 = vld [vmem:[#allocation5 + $0x20] sm:$0xff]
    %v94 = vld [vmem:[#allocation5 + $0x28] sm:$0xff]
    %v95 = vld [vmem:[#allocation5 + $0x30] sm:$0xff]
    %v96 = vld [vmem:[#allocation5 + $0x38] sm:$0xff]
    %v97 = vld [vmem:[#allocation5 + $0x40] sm:$0xff]
    %v98 = vld [vmem:[#allocation5 + $0x48] sm:$0xff]
    %v99 = vld [vmem:[#allocation5 + $0x50] sm:$0xff]
    %v100 = vld [vmem:[#allocation5 + $0x58] sm:$0xff]
    %v101 = vld [vmem:[#allocation5 + $0x60] sm:$0xff]
    %v102 = vld [vmem:[#allocation5 + $0x68] sm:$0xff]
    %v103 = vld [vmem:[#allocation5 + $0x70] sm:$0xff]
    %v104 = vld [vmem:[#allocation5 + $0x78] sm:$0xff]
    %v105 = vld [vmem:[%s2] sm:$0x1]
    %v107 = vperm.slane %v105, 0
    %109 = vmatpush.msra.mxu0 %v104
    %110 = vmatpush.msra.mxu0 %v103
    %111 = vmatpush.msra.mxu0 %v102
    %112 = vmatpush.msra.mxu0 %v101
    %113 = vmatpush.msra.mxu0 %v100
    %114 = vmatpush.msra.mxu0 %v99
    %115 = vmatpush.msra.mxu0 %v98
    %116 = vmatpush.msra.mxu0 %v97
    %117 = vmatpush.msra.mxu0 %v96
    %118 = vmatpush.msra.mxu0 %v95
    %119 = vmatpush.msra.mxu0 %v94
    %120 = vmatpush.msra.mxu0 %v93
    %121 = vmatpush.msra.mxu0 %v92
    %122 = vmatpush.msra.mxu0 %v91
    %123 = vmatpush.msra.mxu0 %v90
    %124 = vmatpush.msra.mxu0 %v89
    %125 = vmatmul.f32.gmra.mxu0 %v87
    %v126 = vpop.f32.mrf.mxu0
    %v127 = vadd.f32 %v107, %v126
    %128 = vmatmul.f32.gmra.mxu0 %v88
    %v129 = vpop.f32.mrf.mxu0
    %v130 = vadd.f32 %v107, %v129
    %131 = vdwg.mxu0
    %132 = vst [vmem:[#allocation10] sm:$0xff] %v127
    %133 = vst [vmem:[#allocation10 + $0x8] sm:$0xff] %v130
    %v134 = vld [vmem:[#allocation7] sm:$0xff]
    %v135 = vld [vmem:[#allocation7 + $0x8] sm:$0xff]
    %v136 = vsub.f32 %v127, %v134
    %v137 = vsub.f32 %v130, %v135
    %v138 = vadd.f32 %v136, 1e-06
    %v139 = vadd.f32 %v137, 1e-06
    %v140 = vld [vmem:[#allocation8] sm:$0xff]
    %v141 = vld [vmem:[#allocation8 + $0x8] sm:$0xff]
    %v142 = vsub.f32 %v127, %v140
    %v143 = vsub.f32 %v130, %v141
    %v144 = vadd.f32 %v142, 1e-06
    %v145 = vadd.f32 %v143, 1e-06
    %v146 = vmul.f32 %v138, %v138
    %v147 = vmul.f32 %v139, %v139
    %148 = vadd.xlane.f32.xlu0 %v146
    %v149 = vpop.xlane.xlu0 %148
    %150 = vadd.xlane.f32.xlu0 %v147
    %v151 = vpop.xlane.xlu0 %150
    %v152 = vrsqrt.pop %v149
    %v153 = vmul.f32 %v152, %v149
    %v154 = vmul.f32 %v153, %v152
    %v155 = vmul.f32 0.5, %v154
    %v156 = vsub.f32 1.5, %v155
    %v157 = vmul.f32 %v152, %v156
    %v158 = vmul.f32 %v149, %v157
    %vm159 = vcmp.eq.f32.partialorder %v149, inf
    %v160 = vsel %vm159, %v149, %v158
    %vm161 = vcmp.eq.f32.partialorder %v149, 0.0
    %v162 = vand.u32 %v149, 2147483648
    %v163 = vsel %vm161, %v162, %v160
    %v164 = vrsqrt.pop %v151
    %v165 = vmul.f32 %v164, %v151
    %v166 = vmul.f32 %v165, %v164
    %v167 = vmul.f32 0.5, %v166
    %v168 = vsub.f32 1.5, %v167
    %v169 = vmul.f32 %v164, %v168
    %v170 = vmul.f32 %v151, %v169
    %vm171 = vcmp.eq.f32.partialorder %v151, inf
    %v172 = vsel %vm171, %v151, %v170
    %vm173 = vcmp.eq.f32.partialorder %v151, 0.0
    %v174 = vand.u32 %v151, 2147483648
    %v175 = vsel %vm173, %v174, %v172
    %v176 = vmul.f32 %v144, %v144
    %v177 = vmul.f32 %v145, %v145
    %178 = vadd.xlane.f32.xlu0 %v176
    %v179 = vpop.xlane.xlu0 %178
    %180 = vadd.xlane.f32.xlu0 %v177
    %v181 = vpop.xlane.xlu0 %180
    %v182 = vrsqrt.pop %v179
    %v183 = vmul.f32 %v182, %v179
    %v184 = vmul.f32 %v183, %v182
    %v185 = vmul.f32 0.5, %v184
    %v186 = vsub.f32 1.5, %v185
    %v187 = vmul.f32 %v182, %v186
    %v188 = vmul.f32 %v179, %v187
    %vm189 = vcmp.eq.f32.partialorder %v179, inf
    %v190 = vsel %vm189, %v179, %v188
    %vm191 = vcmp.eq.f32.partialorder %v179, 0.0
    %v192 = vand.u32 %v179, 2147483648
    %v193 = vsel %vm191, %v192, %v190
    %v194 = vrsqrt.pop %v181
    %v195 = vmul.f32 %v194, %v181
    %v196 = vmul.f32 %v195, %v194
    %v197 = vmul.f32 0.5, %v196
    %v198 = vsub.f32 1.5, %v197
    %v199 = vmul.f32 %v194, %v198
    %v200 = vmul.f32 %v181, %v199
    %vm201 = vcmp.eq.f32.partialorder %v181, inf
    %v202 = vsel %vm201, %v181, %v200
    %vm203 = vcmp.eq.f32.partialorder %v181, 0.0
    %v204 = vand.u32 %v181, 2147483648
    %v205 = vsel %vm203, %v204, %v202
    %v208 = vlaneseq
    %v209 = vand.u32 %v208, 127
    %v210 = vperm.slane %v163, %v209
    %v211 = vadd.s32 %v209, 4294967288
    %v212 = vperm.slane %v175, %v211
    %vm213 = vcmask 130112
    %v214 = vsel %vm213, %v212, %v210
    %v218 = vperm.slane %v193, %v209
    %v219 = vperm.slane %v205, %v211
    %v220 = vsel %vm213, %v219, %v218
    %vm222 = vcmask 1040384
    %v223 = vsel %vm222, %v214, %v220
    %vm224 = vcmask 123904
    %225 = vst.msk [vmem:[#allocation11] sm:$0x3] %vm224, %v223
    // Predicated region
    $region38: #{tpu_custom_call.1} parent=1 // pred_check
      _
    $region39: #{tpu_custom_call.1} parent=1 // pred_check_branch
      %227 = sbr.rel (0) target = $region41
    $region40: #{tpu_custom_call.1} parent=1 // pred_region
      %229 = vsyncadd [#allocation4], 0
      %s230 = sshll.u32 [#allocation10], 4
      %s231 = int_to_ptr.vmem [resolvable:$true] %s230
      %s232 = sshll.u32 %s5, 4
      %s233 = int_to_ptr.hbm [resolvable:$true] %s232
      %238 = dma.vmem_to_hbm [thread:$0]  %s231, 256, %s233, [#allocation4], 128, 128, 8
    $region41: #{tpu_custom_call.1} parent=1 // pred_fallthru
      _
    // Predicated region
    $region42: #{tpu_custom_call.1} parent=1 // pred_check
      _
    $region43: #{tpu_custom_call.1} parent=1 // pred_check_branch
      %240 = sbr.rel (0) target = $region45
    $region44: #{tpu_custom_call.1} parent=1 // pred_region
      %242 = vsyncadd [#allocation12], 0
      %s244 = sshll.u32 [#allocation11], 4
      %s245 = int_to_ptr.vmem [resolvable:$true] %s244
      %s246 = sshll.u32 %s6, 4
      %s247 = int_to_ptr.hbm [resolvable:$true] %s246
      %249 = dma.vmem_to_hbm [thread:$0]  %s245, 32, %s247, [#allocation12]
    $region45: #{tpu_custom_call.1} parent=1 // pred_fallthru
      _
    // Predicated region
    $region46: #{tpu_custom_call.1} parent=1 // pred_check
      _
    $region47: #{tpu_custom_call.1} parent=1 // pred_check_branch
      %251 = sbr.rel (0) target = $region49
    $region48: #{tpu_custom_call.1} parent=1 // pred_region
      %253 = dma.done [#allocation4], 256
    $region49: #{tpu_custom_call.1} parent=1 // pred_fallthru
      _
    // Predicated region
    $region50: #{tpu_custom_call.1} parent=1 // pred_check
      _
    $region51: #{tpu_custom_call.1} parent=1 // pred_check_branch
      %255 = sbr.rel (0) target = $region53
    $region52: #{tpu_custom_call.1} parent=1 // pred_region
      %257 = dma.done [#allocation12], 32
    $region53: #{tpu_custom_call.1} parent=1 // pred_fallthru
      _
    %258 = vsyncpa [#allocation3], 1
    %259 = vsyncpa [#allocation6], 1
    %260 = vsyncpa [#allocation9], 1
    %261 = vsyncpa [#allocation4], 1
    %262 = vsyncpa [#allocation12], 1

</llo_original>
